<compile_context>
chip_gen: v5e
topology: v5e:2x2
jax: 0.10.0
libtpu: 0.0.40
codegen_flags: <defaults>
</compile_context>

<pallas_src>
import functools
import math

import jax
import jax.numpy as jnp
from jax.experimental import pallas as pl
from jax.experimental.pallas import tpu as pltpu


# ---------------------------------------------------------------------------
# Kernel
# ---------------------------------------------------------------------------
def head_kernel(x_ref, lms_ref, wl_ref, wpack_ref, vec_ref, logits_ref, feat_ref):
    bf = jnp.bfloat16

    # Packed per-feature vectors (f32, one resident (8,256) block):
    #   row 0: fc_lms bias (256)
    #   row 1: BN scale, padded 250 -> 256 with zeros
    #   row 2: BN bias,  padded 250 -> 256 with zeros
    #   row 3: folded classifier bias (bn_bias @ W_cls^T), padded 50 -> 128
    b_lms = vec_ref[0:1, :]           # (1, 256)
    bn_s = vec_ref[1:2, :]            # (1, 256)
    bn_b = vec_ref[2:3, :]            # (1, 256)
    cls_b = vec_ref[3:4, :128]        # (1, 128)

    # Resident weights packed into one (256, 640) bf16 operand.
    # Slices are at 128-lane-aligned offsets (no relayout).
    wh_lms = wpack_ref[:, 0:256]      # fc_head[:, :256]^T  (N padded 250 -> 256)
    wh_x = wpack_ref[:, 256:512]      # fc_head[:, 256:]^T  (N padded 250 -> 256)
    wc = wpack_ref[:, 512:640]        # BN-folded classifier^T (50 -> 128)

    # fc_lms (K = 136, native width) + bias + ReLU. bf16 on MXU, f32 accumulate;
    # the f32->bf16 cast of the activations happens here (no wrapper HBM pass).
    h = jnp.dot(lms_ref[...].astype(bf), wl_ref[...],
                preferred_element_type=jnp.float32)
    h = jnp.maximum(h + b_lms, 0.0)

    # fc_head on concat([h, x]) expressed as a split matmul (no VMEM concat):
    #   cat([h, x]) @ W_head^T == h @ W_head[:, :256]^T + x @ W_head[:, 256:]^T
    f = jnp.dot(h.astype(bf), wh_lms, preferred_element_type=jnp.float32)
    f = f + jnp.dot(x_ref[...].astype(bf), wh_x, preferred_element_type=jnp.float32)
    f = jnp.maximum(f, 0.0)

    # dropout: identity in eval mode.
    # bn_head (eval, running stats folded into scale/bias); f32 epilogue, bf16 store.
    feat_ref[...] = (f * bn_s + bn_b).astype(feat_ref.dtype)

    # classifier with BN folded in:
    #   logits = f @ (diag(bn_s) @ W_cls^T) + bn_b @ W_cls^T
    logits_ref[...] = (jnp.dot(f.astype(bf), wc, preferred_element_type=jnp.float32)
                       + cls_b).astype(logits_ref.dtype)


# ---------------------------------------------------------------------------
# Wrapper
# ---------------------------------------------------------------------------
def _round_up(x, m):
    return (x + m - 1) // m * m


def _choose_tm(B, tm_cap):
    if B <= 8:
        return B                              # single full-dim block
    tm = _round_up(pl.cdiv(B, 2), 8)          # aim for >= 2 grid steps (v7x dual-TC)
    return max(8, min(tm_cap, tm))


def _head_pallas(x_feat, lms, kparams, tm):
    """Raw kernel call; returns lane-padded bf16 (B,128) logits and (B,256) feat."""
    B = x_feat.shape[0]
    TM = _choose_tm(B, tm)
    grid = (pl.cdiv(B, TM),)                  # partial last block is masked by Pallas
    bf = jnp.bfloat16

    act = lambda w: pl.BlockSpec((TM, w), lambda i: (i, 0))      # blocked over batch
    res = lambda r, c: pl.BlockSpec((r, c), lambda i: (0, 0))    # resident weights

    return pl.pallas_call(
        head_kernel,
        out_shape=(jax.ShapeDtypeStruct((B, 128), bf),   # logits (lane-padded)
                   jax.ShapeDtypeStruct((B, 256), bf)),  # feat   (lane-padded)
        grid=grid,
        in_specs=[act(256),            # x_feat, native dtype (cast in-kernel)
                  act(136),            # lms, native 136-wide (cast in-kernel)
                  res(136, 256),       # w_lms^T (bf16, native K=136)
                  res(256, 640),       # packed [wh_lms | wh_x | w_cls_fold] (bf16)
                  res(8, 256)],        # packed bias/scale vectors (f32)
        out_specs=(act(128), act(256)),
        compiler_params=pltpu.CompilerParams(
            dimension_semantics=("parallel",)),
    )(x_feat, lms, kparams["w_lms_t"], kparams["w_pack"], kparams["vec"])


@functools.partial(jax.jit, static_argnames=("tm",))
def baseline_head(x_feat, lms, kparams, *, tm=512):
    """x_feat: (B, 256) backbone features, lms: (B, 136) landmarks.

    Returns (logits (B, 50), feat (B, 250)) as bf16. Consumers that can take
    the lane-padded (B,128)/(B,256) buffers should call _head_pallas directly;
    under jit the slices below fuse with downstream ops.
    """
    logits_p, feat_p = _head_pallas(x_feat, lms, kparams, tm)
    return logits_p[:, :50], feat_p[:, :250]


# ---------------------------------------------------------------------------
# Parameters
# ---------------------------------------------------------------------------
def init_params(key):
    """f32 master parameters matching the PyTorch module's initialization."""
    k1, k2, k3 = jax.random.split(key, 3)
    # fc_lms: Linear(136, 256, bias) -- kaiming_normal_(mode='fan_out'), bias = 0
    w_lms = jax.random.normal(k1, (256, 136), jnp.float32) * math.sqrt(2.0 / 256.0)
    b_lms = jnp.zeros((256,), jnp.float32)
    # fc_head: Linear(512, 250, bias=False) -- normal(std=0.001)
    w_head = jax.random.normal(k2, (250, 512), jnp.float32) * 0.001
    # classifier: Linear(250, 50, bias=False) -- normal(std=0.001)
    w_cls = jax.random.normal(k3, (50, 250), jnp.float32) * 0.001
    # bn_head: BatchNorm1d(250) at init / eval running stats
    return {
        "w_lms": w_lms, "b_lms": b_lms, "w_head": w_head, "w_cls": w_cls,
        "gamma": jnp.ones((250,), jnp.float32),
        "beta": jnp.zeros((250,), jnp.float32),
        "running_mean": jnp.zeros((250,), jnp.float32),
        "running_var": jnp.ones((250,), jnp.float32),
    }


def pack_params(p):
    """Pad / transpose / fold / cast master params into kernel-ready arrays."""
    eps = 1e-5
    bn_scale = p["gamma"] / jnp.sqrt(p["running_var"] + eps)          # (250,)
    bn_bias = p["beta"] - p["running_mean"] * bn_scale                # (250,)

    w_lms_t = p["w_lms"].T                                            # (136, 256) native K
    w_head_t = p["w_head"].T                                          # (512, 250)
    w_cls_t = p["w_cls"].T                                            # (250, 50)
    w_cls_fold = w_cls_t * bn_scale[:, None]                          # BN scale folded
    cls_bias = bn_bias @ w_cls_t                                      # (50,) BN bias folded

    # One resident operand: [ wh_lms(256) | wh_x(256) | w_cls_fold(128) ] -> (256, 640)
    w_pack = jnp.zeros((256, 640), jnp.float32)
    w_pack = w_pack.at[:256, 0:250].set(w_head_t[:256])
    w_pack = w_pack.at[:256, 256:506].set(w_head_t[256:])
    w_pack = w_pack.at[:250, 512:562].set(w_cls_fold)

    vec = jnp.zeros((8, 256), jnp.float32)
    vec = vec.at[0, :256].set(p["b_lms"])
    vec = vec.at[1, :250].set(bn_scale)
    vec = vec.at[2, :250].set(bn_bias)
    vec = vec.at[3, :50].set(cls_bias)

    bf = jnp.bfloat16
    return {
        "w_lms_t": w_lms_t.astype(bf),
        "w_pack": w_pack.astype(bf),
        "vec": vec,
    }


# ---------------------------------------------------------------------------
# Pure-JAX f32 reference (module semantics, eval mode)
# ---------------------------------------------------------------------------
def reference_head(x_feat, lms, p):
    eps = 1e-5
    h = jnp.maximum(lms @ p["w_lms"].T + p["b_lms"], 0.0)
    xcat = jnp.concatenate([h, x_feat], axis=1)
    f = jnp.maximum(xcat @ p["w_head"].T, 0.0)
    scale = p["gamma"] / jnp.sqrt(p["running_var"] + eps)
    feat = (f - p["running_mean"]) * scale + p["beta"]
    logits = feat @ p["w_cls"].T
    return logits, feat


if __name__ == "__main__":
    key = jax.random.PRNGKey(0)
    k_params, k_x, k_lms = jax.random.split(key, 3)

    # B = 12 -> TM = 8, grid = (2,): exercises >=2 grid steps and the masked
    # partial last block (no batch padding in the wrapper).
    B = 12
    master = init_params(k_params)
    kparams = pack_params(master)
    x_feat = jax.random.normal(k_x, (B, 256), jnp.float32)   # backbone output features
    lms = jax.random.normal(k_lms, (B, 136), jnp.float32)    # 68 landmarks * 2

    logits, feat = baseline_head(x_feat, lms, kparams)
    jax.block_until_ready((logits, feat))

    ref_logits, ref_feat = reference_head(x_feat, lms, master)
    assert logits.shape == (B, 50) and feat.shape == (B, 250)

    logits_f = logits.astype(jnp.float32)
    feat_f = feat.astype(jnp.float32)
    # bf16 weights / activations / output storage -> looser tolerance than pure f32.
    assert jnp.allclose(logits_f, ref_logits, atol=1e-3, rtol=1e-2), \
        float(jnp.max(jnp.abs(logits_f - ref_logits)))
    assert jnp.allclose(feat_f, ref_feat, atol=3e-3, rtol=1e-2), \
        float(jnp.max(jnp.abs(feat_f - ref_feat)))

    print("KERNEL_OK")
</pallas_src>

<mosaic_0001>
module attributes {stable_mosaic.version = 11 : i64} {
  func.func @head_kernel(%arg0: i32, %arg1: memref<8x256xf32, #tpu.memory_space<vmem>>, %arg2: memref<8x136xf32, #tpu.memory_space<vmem>>, %arg3: memref<136x256xbf16, #tpu.memory_space<vmem>>, %arg4: memref<256x640xbf16, #tpu.memory_space<vmem>>, %arg5: memref<8x256xf32, #tpu.memory_space<vmem>>, %arg6: memref<8x128xbf16, #tpu.memory_space<vmem>>, %arg7: memref<8x256xbf16, #tpu.memory_space<vmem>>) attributes {dimension_semantics = [#tpu.dimension_semantics<parallel>], iteration_bounds = array<i64: 2>, scalar_prefetch = 0 : i64, scratch_operands = 0 : i64, tpu.core_type = #tpu.core_type<tc>, window_params = [{transform_indices = @transform_0, window_bounds = array<i64: 8, 256>}, {transform_indices = @transform_1, window_bounds = array<i64: 8, 136>}, {pipeline_mode = #tpu.pipeline_mode<synchronous>, transform_indices = @transform_2, window_bounds = array<i64: 136, 256>}, {pipeline_mode = #tpu.pipeline_mode<synchronous>, transform_indices = @transform_3, window_bounds = array<i64: 256, 640>}, {pipeline_mode = #tpu.pipeline_mode<synchronous>, transform_indices = @transform_4, window_bounds = array<i64: 8, 256>}, {transform_indices = @transform_5, window_bounds = array<i64: 8, 128>}, {transform_indices = @transform_6, window_bounds = array<i64: 8, 256>}]} {
    %c0 = arith.constant 0 : index
    %c0_0 = arith.constant 0 : index
    %0 = vector.load %arg5[%c0, %c0_0] : memref<8x256xf32, #tpu.memory_space<vmem>>, vector<1x256xf32>
    %c1 = arith.constant 1 : index
    %c0_1 = arith.constant 0 : index
    %1 = vector.load %arg5[%c1, %c0_1] : memref<8x256xf32, #tpu.memory_space<vmem>>, vector<1x256xf32>
    %c2 = arith.constant 2 : index
    %c0_2 = arith.constant 0 : index
    %2 = vector.load %arg5[%c2, %c0_2] : memref<8x256xf32, #tpu.memory_space<vmem>>, vector<1x256xf32>
    %c3 = arith.constant 3 : index
    %c0_3 = arith.constant 0 : index
    %3 = vector.load %arg5[%c3, %c0_3] : memref<8x256xf32, #tpu.memory_space<vmem>>, vector<1x128xf32>
    %c0_4 = arith.constant 0 : index
    %c0_5 = arith.constant 0 : index
    %4 = vector.load %arg4[%c0_4, %c0_5] : memref<256x640xbf16, #tpu.memory_space<vmem>>, vector<256x256xbf16>
    %c0_6 = arith.constant 0 : index
    %c256 = arith.constant 256 : index
    %5 = vector.load %arg4[%c0_6, %c256] : memref<256x640xbf16, #tpu.memory_space<vmem>>, vector<256x256xbf16>
    %c0_7 = arith.constant 0 : index
    %c512 = arith.constant 512 : index
    %6 = vector.load %arg4[%c0_7, %c512] : memref<256x640xbf16, #tpu.memory_space<vmem>>, vector<256x128xbf16>
    %c0_8 = arith.constant 0 : index
    %c0_9 = arith.constant 0 : index
    %7 = vector.load %arg2[%c0_8, %c0_9] : memref<8x136xf32, #tpu.memory_space<vmem>>, vector<8x136xf32>
    %8 = arith.truncf %7 : vector<8x136xf32> to vector<8x136xbf16>
    %c0_10 = arith.constant 0 : index
    %c0_11 = arith.constant 0 : index
    %9 = vector.load %arg3[%c0_10, %c0_11] : memref<136x256xbf16, #tpu.memory_space<vmem>>, vector<136x256xbf16>
    %cst = arith.constant dense<0.000000e+00> : vector<8x256xf32>
    %10 = tpu.matmul %8, %9, %cst {dimension_numbers = #tpu.dot_dimension_numbers<[1], [0], [0], [1], [0, 0, 1, 1], [], []>} : vector<8x136xbf16>, vector<136x256xbf16>, vector<8x256xf32> -> vector<8x256xf32>
    %11 = vector.broadcast %0 : vector<1x256xf32> to vector<8x256xf32>
    %12 = arith.addf %10, %11 : vector<8x256xf32>
    %cst_12 = arith.constant 0.000000e+00 : f32
    %13 = vector.broadcast %cst_12 : f32 to vector<8x256xf32>
    %14 = arith.maximumf %12, %13 : vector<8x256xf32>
    %15 = arith.truncf %14 : vector<8x256xf32> to vector<8x256xbf16>
    %cst_13 = arith.constant dense<0.000000e+00> : vector<8x256xf32>
    %16 = tpu.matmul %15, %4, %cst_13 {dimension_numbers = #tpu.dot_dimension_numbers<[1], [0], [0], [1], [0, 0, 1, 1], [], []>} : vector<8x256xbf16>, vector<256x256xbf16>, vector<8x256xf32> -> vector<8x256xf32>
    %c0_14 = arith.constant 0 : index
    %c0_15 = arith.constant 0 : index
    %17 = vector.load %arg1[%c0_14, %c0_15] : memref<8x256xf32, #tpu.memory_space<vmem>>, vector<8x256xf32>
    %18 = arith.truncf %17 : vector<8x256xf32> to vector<8x256xbf16>
    %cst_16 = arith.constant dense<0.000000e+00> : vector<8x256xf32>
    %19 = tpu.matmul %18, %5, %cst_16 {dimension_numbers = #tpu.dot_dimension_numbers<[1], [0], [0], [1], [0, 0, 1, 1], [], []>} : vector<8x256xbf16>, vector<256x256xbf16>, vector<8x256xf32> -> vector<8x256xf32>
    %20 = arith.addf %16, %19 : vector<8x256xf32>
    %cst_17 = arith.constant 0.000000e+00 : f32
    %21 = vector.broadcast %cst_17 : f32 to vector<8x256xf32>
    %22 = arith.maximumf %20, %21 : vector<8x256xf32>
    %23 = vector.broadcast %1 : vector<1x256xf32> to vector<8x256xf32>
    %24 = arith.mulf %22, %23 : vector<8x256xf32>
    %25 = vector.broadcast %2 : vector<1x256xf32> to vector<8x256xf32>
    %26 = arith.addf %24, %25 : vector<8x256xf32>
    %27 = arith.truncf %26 : vector<8x256xf32> to vector<8x256xbf16>
    %c0_18 = arith.constant 0 : index
    %c0_19 = arith.constant 0 : index
    %28 = vector.load %arg7[%c0_18, %c0_19] : memref<8x256xbf16, #tpu.memory_space<vmem>>, vector<8x256xbf16>
    tpu.vector_store %arg7[%c0_18, %c0_19], %27 {strides = array<i32>} : memref<8x256xbf16, #tpu.memory_space<vmem>>, vector<8x256xbf16>,
    %29 = arith.truncf %22 : vector<8x256xf32> to vector<8x256xbf16>
    %cst_20 = arith.constant dense<0.000000e+00> : vector<8x128xf32>
    %30 = tpu.matmul %29, %6, %cst_20 {dimension_numbers = #tpu.dot_dimension_numbers<[1], [0], [0], [1], [0, 0, 1, 1], [], []>} : vector<8x256xbf16>, vector<256x128xbf16>, vector<8x128xf32> -> vector<8x128xf32>
    %31 = vector.broadcast %3 : vector<1x128xf32> to vector<8x128xf32>
    %32 = arith.addf %30, %31 : vector<8x128xf32>
    %33 = arith.truncf %32 : vector<8x128xf32> to vector<8x128xbf16>
    %c0_21 = arith.constant 0 : index
    %c0_22 = arith.constant 0 : index
    %34 = vector.load %arg6[%c0_21, %c0_22] : memref<8x128xbf16, #tpu.memory_space<vmem>>, vector<8x128xbf16>
    tpu.vector_store %arg6[%c0_21, %c0_22], %33 {strides = array<i32>} : memref<8x128xbf16, #tpu.memory_space<vmem>>, vector<8x128xbf16>,
    return
  }
  func.func @transform_0(%arg0: i32) -> (i32, i32) {
    %c0_i32 = arith.constant 0 : i32
    %c0_i32_0 = arith.constant 0 : i32
    return %arg0, %c0_i32 : i32, i32
  }
  func.func @transform_1(%arg0: i32) -> (i32, i32) {
    %c0_i32 = arith.constant 0 : i32
    %c0_i32_0 = arith.constant 0 : i32
    return %arg0, %c0_i32 : i32, i32
  }
  func.func @transform_2(%arg0: i32) -> (i32, i32) {
    %c0_i32 = arith.constant 0 : i32
    %c0_i32_0 = arith.constant 0 : i32
    %c0_i32_1 = arith.constant 0 : i32
    return %c0_i32, %c0_i32_0 : i32, i32
  }
  func.func @transform_3(%arg0: i32) -> (i32, i32) {
    %c0_i32 = arith.constant 0 : i32
    %c0_i32_0 = arith.constant 0 : i32
    %c0_i32_1 = arith.constant 0 : i32
    return %c0_i32, %c0_i32_0 : i32, i32
  }
  func.func @transform_4(%arg0: i32) -> (i32, i32) {
    %c0_i32 = arith.constant 0 : i32
    %c0_i32_0 = arith.constant 0 : i32
    %c0_i32_1 = arith.constant 0 : i32
    return %c0_i32, %c0_i32_0 : i32, i32
  }
  func.func @transform_5(%arg0: i32) -> (i32, i32) {
    %c0_i32 = arith.constant 0 : i32
    %c0_i32_0 = arith.constant 0 : i32
    return %arg0, %c0_i32 : i32, i32
  }
  func.func @transform_6(%arg0: i32) -> (i32, i32) {
    %c0_i32 = arith.constant 0 : i32
    %c0_i32_0 = arith.constant 0 : i32
    return %arg0, %c0_i32 : i32, i32
  }
}

</mosaic_0001>

<llo_original>
// kernel: baseline_head.1
$region0: #{baseline_head.1}
  #allocation0 [shape = 'u32[]', space=smem, size = 0x4, offset = 0x4, fixed_abs, tag = 'smem constant byte address 0x4 - core index']
  #allocation1 [shape = 'u32[72,128]{1,0:T(1,128)}', space=vmem, size = 0x9000, scoped, tag = 'internal scratch']
  %s0 = inlined_call_operand.hbm [shape: f32[12,256], index: 0, kind: input, shape index: {}]
  %s1 = inlined_call_operand.hbm [shape: f32[12,136], index: 1, kind: input, shape index: {}]
  %s2 = inlined_call_operand.hbm [shape: bf16[136,256], index: 2, kind: input, shape index: {}]
  %s3 = inlined_call_operand.hbm [shape: bf16[256,640], index: 3, kind: input, shape index: {}]
  %s4 = inlined_call_operand.hbm [shape: f32[8,256], index: 4, kind: input, shape index: {}]
  %s5 = inlined_call_operand.hbm [shape: bf16[12,128], index: 5, kind: output, shape index: {0}]
  %s6 = inlined_call_operand.hbm [shape: bf16[12,256], index: 6, kind: output, shape index: {1}]
  %7 = xla_tuple %s5, %s6
  %s8 = sld [smem:[#allocation0]]
  $region81: #{baseline_head.1} parent=0
    _
  %s10 = ssub.s32 1, %s8
  %s11 = scalar_select 0, %s10, %s8
  $region1: #{baseline_head.1} parent=0
    #allocation2 [shape = 'u8[16384]{0}', space=vmem, size = 0x4000, scoped, tag = 'input window, operand 0']
    #allocation3 [shape = 's32[2]{0}', space=sflag, size = 0x8, scoped, tag = 'scoped memory for baseline_head.1']
    #allocation4 [shape = 's32[2]{0}', space=sflag, size = 0x8, scoped, tag = 'scoped memory for baseline_head.1']
    #allocation5 [shape = 'u8[16384]{0}', space=vmem, size = 0x4000, scoped, tag = 'input window, operand 1']
    #allocation6 [shape = 's32[2]{0}', space=sflag, size = 0x8, scoped, tag = 'scoped memory for baseline_head.1']
    #allocation7 [shape = 'u8[69632]{0}', space=vmem, size = 0x11000, scoped, tag = 'input window, operand 2, single buffered']
    #allocation8 [shape = 'u8[327680]{0}', space=vmem, size = 0x50000, scoped, tag = 'input window, operand 3, single buffered']
    #allocation9 [shape = 's32[1]{0}', space=sflag, size = 0x4, scoped, tag = 'scoped memory for baseline_head.1']
    #allocation10 [shape = 'u8[8192]{0}', space=vmem, size = 0x2000, scoped, tag = 'input window, operand 4, single buffered']
    #allocation11 [shape = 'u8[4096]{0}', space=vmem, size = 0x1000, scoped, tag = 'output window, operand 0']
    #allocation12 [shape = 'u8[8192]{0}', space=vmem, size = 0x2000, scoped, tag = 'output window, operand 1']
    #allocation13 [shape = 's32[2]{0}', space=sflag, size = 0x8, scoped, tag = 'scoped memory for baseline_head.1']
    %12 = vsyncpa [#allocation3], 0
    %s13 = scalar_lea.sflag [#allocation3], 1
    %14 = vsyncpa %s13, 0
    %15 = vsyncpa [#allocation6], 0
    %s16 = scalar_lea.sflag [#allocation6], 1
    %17 = vsyncpa %s16, 0
    %18 = vsyncpa [#allocation9], 0
    %19 = vsyncpa [#allocation4], 0
    %s20 = scalar_lea.sflag [#allocation4], 1
    %21 = vsyncpa %s20, 0
    %22 = vsyncpa [#allocation13], 0
    %s23 = scalar_lea.sflag [#allocation13], 1
    %24 = vsyncpa %s23, 0
    loop: start=0, step=1, limit=4
    $region2: #{baseline_head.1} parent=1 // loop_pre_header
      _
    $region3: #{baseline_head.1} parent=1 // loop_header
      %s26 = sphi 0, %s30
      %p27 = scmp.ge.s32.totalorder %s26, 4
      %s36 = sphi 0, %s38
      %s39 = sphi 0, %s36
      %s40 = sphi 0, %s39
      %s56 = sphi 0, %s40
      %s62 = sphi 0, %s64
      %s65 = sphi 0, %s62
      %s66 = sphi 0, %s65
      %s82 = sphi 0, %s66
      %s86 = sphi 0, %s86
      %s88 = sphi 0, %s86
      %s89 = sphi 0, %s88
      %s103 = sphi 0, %s89
      %s107 = sphi 0, %s107
      %s109 = sphi 0, %s107
      %s110 = sphi 0, %s109
      %s124 = sphi 0, %s110
      %s128 = sphi 0, %s128
      %s130 = sphi 0, %s128
      %s131 = sphi 0, %s130
      %s145 = sphi 0, %s131
      %s151 = sphi 0, %s153
      %s154 = sphi 0, %s151
      %s155 = sphi 0, %s154
      %s171 = sphi 0, %s155
      %s177 = sphi 0, %s179
      %s180 = sphi 0, %s177
      %s181 = sphi 0, %s180
      %s197 = sphi 0, %s181
    $region4: #{baseline_head.1} parent=1 // loop_header_branch
      %29 = sbr.rel (%p27) target = $region8
    $region5: #{baseline_head.1} parent=1 // loop_body
      %s31 = ssub.s32 %s26, 1
      %s32 = ssub.s32 %s26, 2
      %s33 = sadd.s32 %s26, 1
      %s34 = ssub.s32 %s26, %s33
      %p35 = scmp.eq.s32.totalorder %s34, 0
      %s37 = sadd.s32 %s36, 1
      %s38 = scalar_select %p35, %s36, %s37
      %p41 = pneg %p35
      %p42 = scmp.eq.s32.totalorder %s26, 1
      %p43 = por %p41, %p42
      %p44 = scmp.ne.s32.totalorder %s36, %s39
      %p45 = scmp.eq.s32.totalorder %s26, 0
      %p46 = por %p44, %p45
      %p47 = scmp.ne.s32.totalorder %s36, %s39
      %p48 = scmp.eq.s32.totalorder %s31, 1
      %p49 = por %p47, %p48
      %p50 = scmp.ne.s32.totalorder %s39, %s40
      %p51 = scmp.eq.s32.totalorder %s31, 0
      %p52 = por %p50, %p51
      %p53 = scmp.ne.s32.totalorder %s39, %s40
      %p54 = scmp.eq.s32.totalorder %s32, 1
      %p55 = por %p53, %p54
      %p57 = scmp.ne.s32.totalorder %s40, %s56
      %p58 = scmp.eq.s32.totalorder %s32, 0
      %p59 = por %p57, %p58
      %s60 = ssub.s32 %s26, %s33
      %p61 = scmp.eq.s32.totalorder %s60, 0
      %s63 = sadd.s32 %s62, 1
      %s64 = scalar_select %p61, %s62, %s63
      %p67 = pneg %p61
      %p68 = scmp.eq.s32.totalorder %s26, 1
      %p69 = por %p67, %p68
      %p70 = scmp.ne.s32.totalorder %s62, %s65
      %p71 = scmp.eq.s32.totalorder %s26, 0
      %p72 = por %p70, %p71
      %p73 = scmp.ne.s32.totalorder %s62, %s65
      %p74 = scmp.eq.s32.totalorder %s31, 1
      %p75 = por %p73, %p74
      %p76 = scmp.ne.s32.totalorder %s65, %s66
      %p77 = scmp.eq.s32.totalorder %s31, 0
      %p78 = por %p76, %p77
      %p79 = scmp.ne.s32.totalorder %s65, %s66
      %p80 = scmp.eq.s32.totalorder %s32, 1
      %p81 = por %p79, %p80
      %p83 = scmp.ne.s32.totalorder %s66, %s82
      %p84 = scmp.eq.s32.totalorder %s32, 0
      %p85 = por %p83, %p84
      %s87 = sadd.s32 %s86, 1
      %p90 = scmp.eq.s32.totalorder %s26, 1
      %p91 = scmp.ne.s32.totalorder %s86, %s88
      %p92 = scmp.eq.s32.totalorder %s26, 0
      %p93 = por %p91, %p92
      %p94 = scmp.ne.s32.totalorder %s86, %s88
      %p95 = scmp.eq.s32.totalorder %s31, 1
      %p96 = por %p94, %p95
      %p97 = scmp.ne.s32.totalorder %s88, %s89
      %p98 = scmp.eq.s32.totalorder %s31, 0
      %p99 = por %p97, %p98
      %p100 = scmp.ne.s32.totalorder %s88, %s89
      %p101 = scmp.eq.s32.totalorder %s32, 1
      %p102 = por %p100, %p101
      %p104 = scmp.ne.s32.totalorder %s89, %s103
      %p105 = scmp.eq.s32.totalorder %s32, 0
      %p106 = por %p104, %p105
      %s108 = sadd.s32 %s107, 1
      %p111 = scmp.eq.s32.totalorder %s26, 1
      %p112 = scmp.ne.s32.totalorder %s107, %s109
      %p113 = scmp.eq.s32.totalorder %s26, 0
      %p114 = por %p112, %p113
      %p115 = scmp.ne.s32.totalorder %s107, %s109
      %p116 = scmp.eq.s32.totalorder %s31, 1
      %p117 = por %p115, %p116
      %p118 = scmp.ne.s32.totalorder %s109, %s110
      %p119 = scmp.eq.s32.totalorder %s31, 0
      %p120 = por %p118, %p119
      %p121 = scmp.ne.s32.totalorder %s109, %s110
      %p122 = scmp.eq.s32.totalorder %s32, 1
      %p123 = por %p121, %p122
      %p125 = scmp.ne.s32.totalorder %s110, %s124
      %p126 = scmp.eq.s32.totalorder %s32, 0
      %p127 = por %p125, %p126
      %s129 = sadd.s32 %s128, 1
      %p132 = scmp.eq.s32.totalorder %s26, 1
      %p133 = scmp.ne.s32.totalorder %s128, %s130
      %p134 = scmp.eq.s32.totalorder %s26, 0
      %p135 = por %p133, %p134
      %p136 = scmp.ne.s32.totalorder %s128, %s130
      %p137 = scmp.eq.s32.totalorder %s31, 1
      %p138 = por %p136, %p137
      %p139 = scmp.ne.s32.totalorder %s130, %s131
      %p140 = scmp.eq.s32.totalorder %s31, 0
      %p141 = por %p139, %p140
      %p142 = scmp.ne.s32.totalorder %s130, %s131
      %p143 = scmp.eq.s32.totalorder %s32, 1
      %p144 = por %p142, %p143
      %p146 = scmp.ne.s32.totalorder %s131, %s145
      %p147 = scmp.eq.s32.totalorder %s32, 0
      %p148 = por %p146, %p147
      %s149 = ssub.s32 %s26, %s33
      %p150 = scmp.eq.s32.totalorder %s149, 0
      %s152 = sadd.s32 %s151, 1
      %s153 = scalar_select %p150, %s151, %s152
      %p156 = pneg %p150
      %p157 = scmp.eq.s32.totalorder %s26, 1
      %p158 = por %p156, %p157
      %p159 = scmp.ne.s32.totalorder %s151, %s154
      %p160 = scmp.eq.s32.totalorder %s26, 0
      %p161 = por %p159, %p160
      %p162 = scmp.ne.s32.totalorder %s151, %s154
      %p163 = scmp.eq.s32.totalorder %s31, 1
      %p164 = por %p162, %p163
      %p165 = scmp.ne.s32.totalorder %s154, %s155
      %p166 = scmp.eq.s32.totalorder %s31, 0
      %p167 = por %p165, %p166
      %p168 = scmp.ne.s32.totalorder %s154, %s155
      %p169 = scmp.eq.s32.totalorder %s32, 1
      %p170 = por %p168, %p169
      %p172 = scmp.ne.s32.totalorder %s155, %s171
      %p173 = scmp.eq.s32.totalorder %s32, 0
      %p174 = por %p172, %p173
      %s175 = ssub.s32 %s26, %s33
      %p176 = scmp.eq.s32.totalorder %s175, 0
      %s178 = sadd.s32 %s177, 1
      %s179 = scalar_select %p176, %s177, %s178
      %p182 = pneg %p176
      %p183 = scmp.eq.s32.totalorder %s26, 1
      %p184 = por %p182, %p183
      %p185 = scmp.ne.s32.totalorder %s177, %s180
      %p186 = scmp.eq.s32.totalorder %s26, 0
      %p187 = por %p185, %p186
      %p188 = scmp.ne.s32.totalorder %s177, %s180
      %p189 = scmp.eq.s32.totalorder %s31, 1
      %p190 = por %p188, %p189
      %p191 = scmp.ne.s32.totalorder %s180, %s181
      %p192 = scmp.eq.s32.totalorder %s31, 0
      %p193 = por %p191, %p192
      %p194 = scmp.ne.s32.totalorder %s180, %s181
      %p195 = scmp.eq.s32.totalorder %s32, 1
      %p196 = por %p194, %p195
      %p198 = scmp.ne.s32.totalorder %s181, %s197
      %p199 = scmp.eq.s32.totalorder %s32, 0
      %p200 = por %p198, %p199
      %p201 = scmp.le.s32.totalorder 1, %s26
      %p202 = scmp.lt.s32.totalorder %s26, 3
      %p203 = pnand %p201, %p202
      %p204 = pneg %p203
      // Predicated region
      $region9: #{baseline_head.1} parent=5 // pred_check
        _
      $region10: #{baseline_head.1} parent=5 // pred_check_branch
        %206 = sbr.rel (%p203) target = $region12
      $region11: #{baseline_head.1} parent=5 // pred_region
        %s207 = ssub.s32 %s26, 1
        // Predicated region
        $region13: #{baseline_head.1} parent=11 // pred_check
          %p208 = pneg %p99
        $region14: #{baseline_head.1} parent=11 // pred_check_branch
          %210 = sbr.rel (%p208) target = $region16
        $region15: #{baseline_head.1} parent=11 // pred_region
          %212 = vsyncadd [#allocation6], 0
          %s213 = sshll.u32 %s2, 4
          %s214 = int_to_ptr.hbm [resolvable:$true] %s213
          %s215 = sshll.u32 [#allocation7], 4
          %s216 = int_to_ptr.vmem [resolvable:$true] %s215
          %221 = dma.hbm_to_vmem [thread:$0]  %s214, 2176, %s216, [#allocation6], 128, 128, 8
        $region16: #{baseline_head.1} parent=11 // pred_fallthru
          _
        // Predicated region
        $region17: #{baseline_head.1} parent=11 // pred_check
          %p222 = pneg %p120
        $region18: #{baseline_head.1} parent=11 // pred_check_branch
          %224 = sbr.rel (%p222) target = $region20
        $region19: #{baseline_head.1} parent=11 // pred_region
          %226 = vsyncadd [#allocation9], 0
          %s227 = sshll.u32 %s3, 4
          %s228 = int_to_ptr.hbm [resolvable:$true] %s227
          %s229 = sshll.u32 [#allocation8], 4
          %s230 = int_to_ptr.vmem [resolvable:$true] %s229
          %235 = dma.hbm_to_vmem [thread:$0]  %s228, 10240, %s230, [#allocation9], 320, 320, 20
        $region20: #{baseline_head.1} parent=11 // pred_fallthru
          _
        // Predicated region
        $region21: #{baseline_head.1} parent=11 // pred_check
          %p236 = pneg %p141
        $region22: #{baseline_head.1} parent=11 // pred_check_branch
          %238 = sbr.rel (%p236) target = $region24
        $region23: #{baseline_head.1} parent=11 // pred_region
          %240 = vsyncadd [#allocation9], 0
          %s242 = sshll.u32 %s4, 4
          %s243 = int_to_ptr.hbm [resolvable:$true] %s242
          %s244 = sshll.u32 [#allocation10], 4
          %s245 = int_to_ptr.vmem [resolvable:$true] %s244
          %247 = dma.hbm_to_vmem [thread:$0]  %s243, 256, %s245, [#allocation9]
        $region24: #{baseline_head.1} parent=11 // pred_fallthru
          _
      $region12: #{baseline_head.1} parent=5 // pred_fallthru
        _
      %p248 = scmp.lt.s32.totalorder %s26, 2
      // Predicated region
      $region25: #{baseline_head.1} parent=5 // pred_check
        %p249 = pneg %p248
      $region26: #{baseline_head.1} parent=5 // pred_check_branch
        %251 = sbr.rel (%p249) target = $region28
      $region27: #{baseline_head.1} parent=5 // pred_region
        // Predicated region
        $region29: #{baseline_head.1} parent=27 // pred_check
          %p252 = pneg %p46
        $region30: #{baseline_head.1} parent=27 // pred_check_branch
          %254 = sbr.rel (%p252) target = $region32
        $region31: #{baseline_head.1} parent=27 // pred_region
          %s255 = sand.u32 %s36, 1
          %s256 = scalar_lea.sflag [#allocation3], %s255
          %s257 = sand.u32 %s36, 1
          %s258 = smul.addr %s257, 16
          %s259 = scalar_lea.vmem [#allocation2], %s258
          %261 = vsyncadd %s256, 0
          %s262 = smul.addr %s26, 2
          %s263 = smul.addr %s262, 8
          %s264 = scalar_lea.hbm %s0, %s263
          %s266 = sshll.u32 %s264, 4
          %s267 = int_to_ptr.hbm [resolvable:$true] %s266
          %s268 = sshll.u32 %s259, 4
          %s269 = int_to_ptr.vmem [resolvable:$true] %s268
          %271 = dma.hbm_to_vmem [thread:$0]  %s267, 256, %s269, %s256
        $region32: #{baseline_head.1} parent=27 // pred_fallthru
          _
        // Predicated region
        $region33: #{baseline_head.1} parent=27 // pred_check
          %p272 = pneg %p72
        $region34: #{baseline_head.1} parent=27 // pred_check_branch
          %274 = sbr.rel (%p272) target = $region36
        $region35: #{baseline_head.1} parent=27 // pred_region
          %s275 = sand.u32 %s26, 1
          %s276 = scalar_lea.sflag [#allocation6], %s275
          %s277 = sand.u32 %s62, 1
          %s278 = smul.addr %s277, 16
          %s279 = scalar_lea.vmem [#allocation5], %s278
          %281 = vsyncadd %s276, 0
          %s282 = smul.addr %s26, 2
          %s283 = smul.addr %s282, 8
          %s284 = scalar_lea.hbm %s1, %s283
          %s286 = sshll.u32 %s284, 4
          %s287 = int_to_ptr.hbm [resolvable:$true] %s286
          %s288 = sshll.u32 %s279, 4
          %s289 = int_to_ptr.vmem [resolvable:$true] %s288
          %291 = dma.hbm_to_vmem [thread:$0]  %s287, 256, %s289, %s276
        $region36: #{baseline_head.1} parent=27 // pred_fallthru
          _
      $region28: #{baseline_head.1} parent=5 // pred_fallthru
        _
      %p292 = scmp.le.s32.totalorder 1, %s26
      %p293 = scmp.lt.s32.totalorder %s26, 3
      %p294 = pnand %p292, %p293
      %p295 = pneg %p294
      // Predicated region
      $region37: #{baseline_head.1} parent=5 // pred_check
        _
      $region38: #{baseline_head.1} parent=5 // pred_check_branch
        %297 = sbr.rel (%p294) target = $region40
      $region39: #{baseline_head.1} parent=5 // pred_region
        %s298 = ssub.s32 %s26, 1
        %s299 = sand.u32 %s39, 1
        %s300 = scalar_lea.sflag [#allocation3], %s299
        %s301 = sand.u32 %s39, 1
        %s302 = smul.addr %s301, 16
        %s303 = scalar_lea.vmem [#allocation2], %s302
        // Predicated region
        $region41: #{baseline_head.1} parent=39 // pred_check
          %p304 = pneg %p52
        $region42: #{baseline_head.1} parent=39 // pred_check_branch
          %306 = sbr.rel (%p304) target = $region44
        $region43: #{baseline_head.1} parent=39 // pred_region
          %308 = dma.done %s300, 256
        $region44: #{baseline_head.1} parent=39 // pred_fallthru
          _
        %s309 = sand.u32 %s31, 1
        %s310 = scalar_lea.sflag [#allocation6], %s309
        %s311 = sand.u32 %s65, 1
        %s312 = smul.addr %s311, 16
        %s313 = scalar_lea.vmem [#allocation5], %s312
        // Predicated region
        $region45: #{baseline_head.1} parent=39 // pred_check
          %p314 = pneg %p78
        $region46: #{baseline_head.1} parent=39 // pred_check_branch
          %316 = sbr.rel (%p314) target = $region48
        $region47: #{baseline_head.1} parent=39 // pred_region
          %318 = dma.done %s310, 256
        $region48: #{baseline_head.1} parent=39 // pred_fallthru
          _
        // Predicated region
        $region49: #{baseline_head.1} parent=39 // pred_check
          %p319 = pneg %p99
        $region50: #{baseline_head.1} parent=39 // pred_check_branch
          %321 = sbr.rel (%p319) target = $region52
        $region51: #{baseline_head.1} parent=39 // pred_region
          %323 = dma.done [#allocation6], 2176
        $region52: #{baseline_head.1} parent=39 // pred_fallthru
          _
        // Predicated region
        $region53: #{baseline_head.1} parent=39 // pred_check
          %p324 = pneg %p120
        $region54: #{baseline_head.1} parent=39 // pred_check_branch
          %326 = sbr.rel (%p324) target = $region56
        $region55: #{baseline_head.1} parent=39 // pred_region
          %328 = dma.done [#allocation9], 10240
        $region56: #{baseline_head.1} parent=39 // pred_fallthru
          _
        // Predicated region
        $region57: #{baseline_head.1} parent=39 // pred_check
          %p329 = pneg %p141
        $region58: #{baseline_head.1} parent=39 // pred_check_branch
          %331 = sbr.rel (%p329) target = $region60
        $region59: #{baseline_head.1} parent=39 // pred_region
          %333 = dma.done [#allocation9], 256
        $region60: #{baseline_head.1} parent=39 // pred_fallthru
          _
        %s334 = sand.u32 %s39, 1
        %s335 = scalar_lea.sflag [#allocation3], %s334
        %s336 = sand.u32 %s39, 1
        %s337 = smul.addr %s336, 16
        %s338 = scalar_lea.vmem [#allocation2], %s337
        %p339 = pneg %p52
        %p340 = pneg %p49
        %s341 = sand.u32 %s31, 1
        %s342 = scalar_lea.sflag [#allocation6], %s341
        %s343 = sand.u32 %s65, 1
        %s344 = smul.addr %s343, 16
        %s345 = scalar_lea.vmem [#allocation5], %s344
        %p346 = pneg %p78
        %p347 = pneg %p75
        %p348 = pneg %p99
        %p349 = pneg %p96
        %p350 = pneg %p120
        %p351 = pneg %p117
        %p352 = pneg %p141
        %p353 = pneg %p138
        %p354 = pneg %p167
        %p355 = pneg %p164
        %s356 = sand.u32 %s154, 1
        %s357 = scalar_lea.sflag [#allocation4], %s356
        %s358 = sand.u32 %s154, 1
        %s359 = smul.addr %s358, 4
        %s360 = scalar_lea.vmem [#allocation11], %s359
        %p361 = pneg %p193
        %p362 = pneg %p190
        %s363 = sand.u32 %s180, 1
        %s364 = scalar_lea.sflag [#allocation13], %s363
        %s365 = sand.u32 %s180, 1
        %s366 = smul.addr %s365, 8
        %s367 = scalar_lea.vmem [#allocation12], %s366
        %v369 = vld [vmem:[#allocation10] ss:$8 sm:$0x3]
        %s370 = scalar_lea.vmem [#allocation10], 1
        %v371 = vld [vmem:[%s370] ss:$8 sm:$0x3]
        %s372 = scalar_lea.vmem [#allocation10], 2
        %v373 = vld [vmem:[%s372] ss:$8 sm:$0x3]
        %v374 = vld [vmem:[#allocation10 + $0x3] ss:$0 sm:$0xff]
        %v375 = vld [vmem:[#allocation8] sm:$0xff]
        %v376 = vld [vmem:[#allocation8 + $0x14] sm:$0xff]
        %v377 = vld [vmem:[#allocation8 + $0x28] sm:$0xff]
        %v378 = vld [vmem:[#allocation8 + $0x3c] sm:$0xff]
        %v379 = vld [vmem:[#allocation8 + $0x50] sm:$0xff]
        %v380 = vld [vmem:[#allocation8 + $0x64] sm:$0xff]
        %v381 = vld [vmem:[#allocation8 + $0x78] sm:$0xff]
        %v382 = vld [vmem:[#allocation8 + $0x8c] sm:$0xff]
        %v383 = vld [vmem:[#allocation8 + $0xa0] sm:$0xff]
        %v384 = vld [vmem:[#allocation8 + $0xb4] sm:$0xff]
        %v385 = vld [vmem:[#allocation8 + $0xc8] sm:$0xff]
        %v386 = vld [vmem:[#allocation8 + $0xdc] sm:$0xff]
        %v387 = vld [vmem:[#allocation8 + $0xf0] sm:$0xff]
        %v388 = vld [vmem:[#allocation8 + $0x104] sm:$0xff]
        %v389 = vld [vmem:[#allocation8 + $0x118] sm:$0xff]
        %v390 = vld [vmem:[#allocation8 + $0x12c] sm:$0xff]
        %v391 = vld [vmem:[#allocation8 + $0x140] sm:$0xff]
        %v392 = vld [vmem:[#allocation8 + $0x154] sm:$0xff]
        %v393 = vld [vmem:[#allocation8 + $0x168] sm:$0xff]
        %v394 = vld [vmem:[#allocation8 + $0x17c] sm:$0xff]
        %v395 = vld [vmem:[#allocation8 + $0x190] sm:$0xff]
        %v396 = vld [vmem:[#allocation8 + $0x1a4] sm:$0xff]
        %v397 = vld [vmem:[#allocation8 + $0x1b8] sm:$0xff]
        %v398 = vld [vmem:[#allocation8 + $0x1cc] sm:$0xff]
        %v399 = vld [vmem:[#allocation8 + $0x1e0] sm:$0xff]
        %v400 = vld [vmem:[#allocation8 + $0x1f4] sm:$0xff]
        %v401 = vld [vmem:[#allocation8 + $0x208] sm:$0xff]
        %v402 = vld [vmem:[#allocation8 + $0x21c] sm:$0xff]
        %v403 = vld [vmem:[#allocation8 + $0x230] sm:$0xff]
        %v404 = vld [vmem:[#allocation8 + $0x244] sm:$0xff]
        %v405 = vld [vmem:[#allocation8 + $0x258] sm:$0xff]
        %v406 = vld [vmem:[#allocation8 + $0x26c] sm:$0xff]
        %v407 = vld [vmem:[#allocation8 + $0x8] sm:$0xff]
        %v408 = vld [vmem:[#allocation8 + $0x1c] sm:$0xff]
        %v409 = vld [vmem:[#allocation8 + $0x30] sm:$0xff]
        %v410 = vld [vmem:[#allocation8 + $0x44] sm:$0xff]
        %v411 = vld [vmem:[#allocation8 + $0x58] sm:$0xff]
        %v412 = vld [vmem:[#allocation8 + $0x6c] sm:$0xff]
        %v413 = vld [vmem:[#allocation8 + $0x80] sm:$0xff]
        %v414 = vld [vmem:[#allocation8 + $0x94] sm:$0xff]
        %v415 = vld [vmem:[#allocation8 + $0xa8] sm:$0xff]
        %v416 = vld [vmem:[#allocation8 + $0xbc] sm:$0xff]
        %v417 = vld [vmem:[#allocation8 + $0xd0] sm:$0xff]
        %v418 = vld [vmem:[#allocation8 + $0xe4] sm:$0xff]
        %v419 = vld [vmem:[#allocation8 + $0xf8] sm:$0xff]
        %v420 = vld [vmem:[#allocation8 + $0x10c] sm:$0xff]
        %v421 = vld [vmem:[#allocation8 + $0x120] sm:$0xff]
        %v422 = vld [vmem:[#allocation8 + $0x134] sm:$0xff]
        %v423 = vld [vmem:[#allocation8 + $0x148] sm:$0xff]
        %v424 = vld [vmem:[#allocation8 + $0x15c] sm:$0xff]
        %v425 = vld [vmem:[#allocation8 + $0x170] sm:$0xff]
        %v426 = vld [vmem:[#allocation8 + $0x184] sm:$0xff]
        %v427 = vld [vmem:[#allocation8 + $0x198] sm:$0xff]
        %v428 = vld [vmem:[#allocation8 + $0x1ac] sm:$0xff]
        %v429 = vld [vmem:[#allocation8 + $0x1c0] sm:$0xff]
        %v430 = vld [vmem:[#allocation8 + $0x1d4] sm:$0xff]
        %v431 = vld [vmem:[#allocation8 + $0x1e8] sm:$0xff]
        %v432 = vld [vmem:[#allocation8 + $0x1fc] sm:$0xff]
        %v433 = vld [vmem:[#allocation8 + $0x210] sm:$0xff]
        %v434 = vld [vmem:[#allocation8 + $0x224] sm:$0xff]
        %v435 = vld [vmem:[#allocation8 + $0x238] sm:$0xff]
        %v436 = vld [vmem:[#allocation8 + $0x24c] sm:$0xff]
        %v437 = vld [vmem:[#allocation8 + $0x260] sm:$0xff]
        %v438 = vld [vmem:[#allocation8 + $0x274] sm:$0xff]
        %v439 = vld [vmem:[#allocation8 + $0x10] sm:$0xf]
        %v440 = vld [vmem:[#allocation8 + $0x24] sm:$0xf]
        %v441 = vld [vmem:[#allocation8 + $0x38] sm:$0xf]
        %v442 = vld [vmem:[#allocation8 + $0x4c] sm:$0xf]
        %v443 = vld [vmem:[#allocation8 + $0x60] sm:$0xf]
        %v444 = vld [vmem:[#allocation8 + $0x74] sm:$0xf]
        %v445 = vld [vmem:[#allocation8 + $0x88] sm:$0xf]
        %v446 = vld [vmem:[#allocation8 + $0x9c] sm:$0xf]
        %v447 = vld [vmem:[#allocation8 + $0xb0] sm:$0xf]
        %v448 = vld [vmem:[#allocation8 + $0xc4] sm:$0xf]
        %v449 = vld [vmem:[#allocation8 + $0xd8] sm:$0xf]
        %v450 = vld [vmem:[#allocation8 + $0xec] sm:$0xf]
        %v451 = vld [vmem:[#allocation8 + $0x100] sm:$0xf]
        %v452 = vld [vmem:[#allocation8 + $0x114] sm:$0xf]
        %v453 = vld [vmem:[#allocation8 + $0x128] sm:$0xf]
        %v454 = vld [vmem:[#allocation8 + $0x13c] sm:$0xf]
        %v455 = vld [vmem:[#allocation8 + $0x150] sm:$0xf]
        %v456 = vld [vmem:[#allocation8 + $0x164] sm:$0xf]
        %v457 = vld [vmem:[#allocation8 + $0x178] sm:$0xf]
        %v458 = vld [vmem:[#allocation8 + $0x18c] sm:$0xf]
        %v459 = vld [vmem:[#allocation8 + $0x1a0] sm:$0xf]
        %v460 = vld [vmem:[#allocation8 + $0x1b4] sm:$0xf]
        %v461 = vld [vmem:[#allocation8 + $0x1c8] sm:$0xf]
        %v462 = vld [vmem:[#allocation8 + $0x1dc] sm:$0xf]
        %v463 = vld [vmem:[#allocation8 + $0x1f0] sm:$0xf]
        %v464 = vld [vmem:[#allocation8 + $0x204] sm:$0xf]
        %v465 = vld [vmem:[#allocation8 + $0x218] sm:$0xf]
        %v466 = vld [vmem:[#allocation8 + $0x22c] sm:$0xf]
        %v467 = vld [vmem:[#allocation8 + $0x240] sm:$0xf]
        %v468 = vld [vmem:[#allocation8 + $0x254] sm:$0xf]
        %v469 = vld [vmem:[#allocation8 + $0x268] sm:$0xf]
        %v470 = vld [vmem:[#allocation8 + $0x27c] sm:$0xf]
        %v471 = vld [vmem:[%s313] sm:$0xff]
        %v472 = vld [vmem:[%s313 + $0x8] sm:$0xff]
        %v473 = vpack.c.bf16 %v471, %v471
        %v474 = vpack.c.bf16 %v472, %v472
        %v475 = vld [vmem:[#allocation7] sm:$0xff]
        %v476 = vld [vmem:[#allocation7 + $0x8] sm:$0xff]
        %v477 = vld [vmem:[#allocation7 + $0x10] sm:$0xff]
        %v478 = vld [vmem:[#allocation7 + $0x18] sm:$0xff]
        %v479 = vld [vmem:[#allocation7 + $0x20] sm:$0xff]
        %v480 = vld [vmem:[#allocation7 + $0x28] sm:$0xff]
        %v481 = vld [vmem:[#allocation7 + $0x30] sm:$0xff]
        %v482 = vld [vmem:[#allocation7 + $0x38] sm:$0xff]
        %v483 = vld [vmem:[#allocation7 + $0x40] sm:$0xff]
        %v484 = vld [vmem:[#allocation7 + $0x48] sm:$0xff]
        %v485 = vld [vmem:[#allocation7 + $0x50] sm:$0xff]
        %v486 = vld [vmem:[#allocation7 + $0x58] sm:$0xff]
        %v487 = vld [vmem:[#allocation7 + $0x60] sm:$0xff]
        %v488 = vld [vmem:[#allocation7 + $0x68] sm:$0xff]
        %v489 = vld [vmem:[#allocation7 + $0x70] sm:$0xff]
        %v490 = vld [vmem:[#allocation7 + $0x78] sm:$0xff]
        %v491 = vld [vmem:[#allocation7 + $0x80] sm:$0xff]
        %v493 = vperm.slane %v369, 0
        %v494 = vperm.slane %v369, 1
        %v514 = vunpack.c.l.b16 %v475
        %v515 = vunpack.c.h.b16 %v475
        %v516 = vunpack.c.l.b16 %v476
        %v517 = vunpack.c.h.b16 %v476
        %v518 = vunpack.c.l.b16 %v477
        %v519 = vunpack.c.h.b16 %v477
        %v520 = vunpack.c.l.b16 %v478
        %v521 = vunpack.c.h.b16 %v478
        %v522 = vunpack.c.l.b16 %v479
        %v523 = vunpack.c.h.b16 %v479
        %v524 = vunpack.c.l.b16 %v480
        %v525 = vunpack.c.h.b16 %v480
        %v526 = vunpack.c.l.b16 %v481
        %v527 = vunpack.c.h.b16 %v481
        %v528 = vunpack.c.l.b16 %v482
        %v529 = vunpack.c.h.b16 %v482
        %v530 = vunpack.c.l.b16 %v483
        %v531 = vunpack.c.h.b16 %v483
        %v532 = vunpack.c.l.b16 %v484
        %v533 = vunpack.c.h.b16 %v484
        %v534 = vunpack.c.l.b16 %v485
        %v535 = vunpack.c.h.b16 %v485
        %v536 = vunpack.c.l.b16 %v486
        %v537 = vunpack.c.h.b16 %v486
        %v538 = vunpack.c.l.b16 %v487
        %v539 = vunpack.c.h.b16 %v487
        %v540 = vunpack.c.l.b16 %v488
        %v541 = vunpack.c.h.b16 %v488
        %v542 = vunpack.c.l.b16 %v489
        %v543 = vunpack.c.h.b16 %v489
        %v544 = vunpack.c.l.b16 %v490
        %v545 = vunpack.c.h.b16 %v490
        %v546 = vunpack.c.l.b16 %v491
        %v547 = vunpack.c.h.b16 %v491
        %v548 = vpack.c.b16 %v516, %v514
        %v549 = vpack.c.b16 %v517, %v515
        %v550 = vpack.c.b16 %v520, %v518
        %v551 = vpack.c.b16 %v521, %v519
        %v552 = vpack.c.b16 %v524, %v522
        %v553 = vpack.c.b16 %v525, %v523
        %v554 = vpack.c.b16 %v528, %v526
        %v555 = vpack.c.b16 %v529, %v527
        %v556 = vpack.c.b16 %v532, %v530
        %v557 = vpack.c.b16 %v533, %v531
        %v558 = vpack.c.b16 %v536, %v534
        %v559 = vpack.c.b16 %v537, %v535
        %v560 = vpack.c.b16 %v540, %v538
        %v561 = vpack.c.b16 %v541, %v539
        %v562 = vpack.c.b16 %v544, %v542
        %v563 = vpack.c.b16 %v545, %v543
        %v564 = vpack.c.b16 %v546, %v546
        %v565 = vpack.c.b16 %v547, %v547
        %vm582 = vcmask 64512
        %v584 = vsel %vm582, %v474, 0
        %vm586 = vcmask 1043456
        %v588 = vsel %vm586, %v564, 0
        %v591 = vsel %vm586, %v565, 0
        %593 = vmatpush.bf16.msra.mxu0 %v562
        %594 = vmatpush.bf16.msra.mxu0 %v560
        %595 = vmatpush.bf16.msra.mxu0 %v558
        %596 = vmatpush.bf16.msra.mxu0 %v556
        %597 = vmatpush.bf16.msra.mxu0 %v554
        %598 = vmatpush.bf16.msra.mxu0 %v552
        %599 = vmatpush.bf16.msra.mxu0 %v550
        %600 = vmatpush.bf16.msra.mxu0 %v548
        %601 = vmatmul.bf16.gmra.mxu0 %v473
        %v602 = vpop.f32.mrf.mxu0
        %v603 = vadd.f32 %v493, %v602
        %v604 = vpop.f32.mrf.mxu0
        %605 = vdwg.mxu0
        %606 = vmatpush.bf16.msra.mxu0 0
        %607 = vmatpush.bf16.msra.mxu0 0
        %608 = vmatpush.bf16.msra.mxu0 0
        %609 = vmatpush.bf16.msra.mxu0 0
        %610 = vmatpush.bf16.msra.mxu0 0
        %611 = vmatpush.bf16.msra.mxu0 0
        %612 = vmatpush.bf16.msra.mxu0 0
        %613 = vmatpush.bf16.msra.mxu0 %v588
        %614 = vmatmul.bf16.gmra.mxu0 %v584
        %v615 = vpop.f32.mrf.mxu0
        %v616 = vadd.f32 %v603, %v615
        %v617 = vpop.f32.mrf.mxu0
        %618 = vdwg.mxu0
        %619 = vmatpush.bf16.msra.mxu0 %v563
        %620 = vmatpush.bf16.msra.mxu0 %v561
        %621 = vmatpush.bf16.msra.mxu0 %v559
        %622 = vmatpush.bf16.msra.mxu0 %v557
        %623 = vmatpush.bf16.msra.mxu0 %v555
        %624 = vmatpush.bf16.msra.mxu0 %v553
        %625 = vmatpush.bf16.msra.mxu0 %v551
        %626 = vmatpush.bf16.msra.mxu0 %v549
        %627 = vmatmul.bf16.gmra.mxu0 %v473
        %v628 = vpop.f32.mrf.mxu0
        %v629 = vadd.f32 %v494, %v628
        %v630 = vpop.f32.mrf.mxu0
        %631 = vdwg.mxu0
        %632 = vmatpush.bf16.msra.mxu0 0
        %633 = vmatpush.bf16.msra.mxu0 0
        %634 = vmatpush.bf16.msra.mxu0 0
        %635 = vmatpush.bf16.msra.mxu0 0
        %636 = vmatpush.bf16.msra.mxu0 0
        %637 = vmatpush.bf16.msra.mxu0 0
        %638 = vmatpush.bf16.msra.mxu0 0
        %639 = vmatpush.bf16.msra.mxu0 %v591
        %640 = vmatmul.bf16.gmra.mxu0 %v584
        %v641 = vpop.f32.mrf.mxu0
        %v642 = vadd.f32 %v629, %v641
        %v643 = vpop.f32.mrf.mxu0
        %644 = vdwg.mxu0
        %v645 = vmax.f32 %v616, 0.0
        %v646 = vmax.f32 %v642, 0.0
        %v647 = vpack.c.bf16 %v645, %v645
        %v648 = vpack.c.bf16 %v646, %v646
        %v649 = vld [vmem:[%s303] sm:$0xff]
        %v650 = vld [vmem:[%s303 + $0x8] sm:$0xff]
        %v651 = vpack.c.bf16 %v649, %v649
        %v652 = vpack.c.bf16 %v650, %v650
        %v685 = vunpack.c.l.b16 %v407
        %v686 = vunpack.c.h.b16 %v407
        %v687 = vunpack.c.l.b16 %v408
        %v688 = vunpack.c.h.b16 %v408
        %v689 = vunpack.c.l.b16 %v409
        %v690 = vunpack.c.h.b16 %v409
        %v691 = vunpack.c.l.b16 %v410
        %v692 = vunpack.c.h.b16 %v410
        %v693 = vunpack.c.l.b16 %v411
        %v694 = vunpack.c.h.b16 %v411
        %v695 = vunpack.c.l.b16 %v412
        %v696 = vunpack.c.h.b16 %v412
        %v697 = vunpack.c.l.b16 %v413
        %v698 = vunpack.c.h.b16 %v413
        %v699 = vunpack.c.l.b16 %v414
        %v700 = vunpack.c.h.b16 %v414
        %v701 = vunpack.c.l.b16 %v415
        %v702 = vunpack.c.h.b16 %v415
        %v703 = vunpack.c.l.b16 %v416
        %v704 = vunpack.c.h.b16 %v416
        %v705 = vunpack.c.l.b16 %v417
        %v706 = vunpack.c.h.b16 %v417
        %v707 = vunpack.c.l.b16 %v418
        %v708 = vunpack.c.h.b16 %v418
        %v709 = vunpack.c.l.b16 %v419
        %v710 = vunpack.c.h.b16 %v419
        %v711 = vunpack.c.l.b16 %v420
        %v712 = vunpack.c.h.b16 %v420
        %v713 = vunpack.c.l.b16 %v421
        %v714 = vunpack.c.h.b16 %v421
        %v715 = vunpack.c.l.b16 %v422
        %v716 = vunpack.c.h.b16 %v422
        %v717 = vunpack.c.l.b16 %v423
        %v718 = vunpack.c.h.b16 %v423
        %v719 = vunpack.c.l.b16 %v424
        %v720 = vunpack.c.h.b16 %v424
        %v721 = vunpack.c.l.b16 %v425
        %v722 = vunpack.c.h.b16 %v425
        %v723 = vunpack.c.l.b16 %v426
        %v724 = vunpack.c.h.b16 %v426
        %v725 = vunpack.c.l.b16 %v427
        %v726 = vunpack.c.h.b16 %v427
        %v727 = vunpack.c.l.b16 %v428
        %v728 = vunpack.c.h.b16 %v428
        %v729 = vunpack.c.l.b16 %v429
        %v730 = vunpack.c.h.b16 %v429
        %v731 = vunpack.c.l.b16 %v430
        %v732 = vunpack.c.h.b16 %v430
        %v733 = vunpack.c.l.b16 %v431
        %v734 = vunpack.c.h.b16 %v431
        %v735 = vunpack.c.l.b16 %v432
        %v736 = vunpack.c.h.b16 %v432
        %v737 = vunpack.c.l.b16 %v433
        %v738 = vunpack.c.h.b16 %v433
        %v739 = vunpack.c.l.b16 %v434
        %v740 = vunpack.c.h.b16 %v434
        %v741 = vunpack.c.l.b16 %v435
        %v742 = vunpack.c.h.b16 %v435
        %v743 = vunpack.c.l.b16 %v436
        %v744 = vunpack.c.h.b16 %v436
        %v745 = vunpack.c.l.b16 %v437
        %v746 = vunpack.c.h.b16 %v437
        %v747 = vunpack.c.l.b16 %v438
        %v748 = vunpack.c.h.b16 %v438
        %v749 = vpack.c.b16 %v687, %v685
        %v750 = vpack.c.b16 %v688, %v686
        %v751 = vpack.c.b16 %v691, %v689
        %v752 = vpack.c.b16 %v692, %v690
        %v753 = vpack.c.b16 %v695, %v693
        %v754 = vpack.c.b16 %v696, %v694
        %v755 = vpack.c.b16 %v699, %v697
        %v756 = vpack.c.b16 %v700, %v698
        %v757 = vpack.c.b16 %v703, %v701
        %v758 = vpack.c.b16 %v704, %v702
        %v759 = vpack.c.b16 %v707, %v705
        %v760 = vpack.c.b16 %v708, %v706
        %v761 = vpack.c.b16 %v711, %v709
        %v762 = vpack.c.b16 %v712, %v710
        %v763 = vpack.c.b16 %v715, %v713
        %v764 = vpack.c.b16 %v716, %v714
        %v765 = vpack.c.b16 %v719, %v717
        %v766 = vpack.c.b16 %v720, %v718
        %v767 = vpack.c.b16 %v723, %v721
        %v768 = vpack.c.b16 %v724, %v722
        %v769 = vpack.c.b16 %v727, %v725
        %v770 = vpack.c.b16 %v728, %v726
        %v771 = vpack.c.b16 %v731, %v729
        %v772 = vpack.c.b16 %v732, %v730
        %v773 = vpack.c.b16 %v735, %v733
        %v774 = vpack.c.b16 %v736, %v734
        %v775 = vpack.c.b16 %v739, %v737
        %v776 = vpack.c.b16 %v740, %v738
        %v777 = vpack.c.b16 %v743, %v741
        %v778 = vpack.c.b16 %v744, %v742
        %v779 = vpack.c.b16 %v747, %v745
        %v780 = vpack.c.b16 %v748, %v746
        %813 = vmatpush.bf16.msra.mxu0 %v763
        %814 = vmatpush.bf16.msra.mxu0 %v761
        %815 = vmatpush.bf16.msra.mxu0 %v759
        %816 = vmatpush.bf16.msra.mxu0 %v757
        %817 = vmatpush.bf16.msra.mxu0 %v755
        %818 = vmatpush.bf16.msra.mxu0 %v753
        %819 = vmatpush.bf16.msra.mxu0 %v751
        %820 = vmatpush.bf16.msra.mxu0 %v749
        %821 = vmatmul.bf16.gmra.mxu0 %v651
        %v822 = vpop.f32.mrf.mxu0
        %v823 = vadd.f32 0.0, %v822
        %v824 = vpop.f32.mrf.mxu0
        %825 = vdwg.mxu0
        %826 = vmatpush.bf16.msra.mxu0 %v779
        %827 = vmatpush.bf16.msra.mxu0 %v777
        %828 = vmatpush.bf16.msra.mxu0 %v775
        %829 = vmatpush.bf16.msra.mxu0 %v773
        %830 = vmatpush.bf16.msra.mxu0 %v771
        %831 = vmatpush.bf16.msra.mxu0 %v769
        %832 = vmatpush.bf16.msra.mxu0 %v767
        %833 = vmatpush.bf16.msra.mxu0 %v765
        %834 = vmatmul.bf16.gmra.mxu0 %v652
        %v835 = vpop.f32.mrf.mxu0
        %v836 = vadd.f32 %v823, %v835
        %v837 = vpop.f32.mrf.mxu0
        %838 = vdwg.mxu0
        %839 = vmatpush.bf16.msra.mxu0 %v764
        %840 = vmatpush.bf16.msra.mxu0 %v762
        %841 = vmatpush.bf16.msra.mxu0 %v760
        %842 = vmatpush.bf16.msra.mxu0 %v758
        %843 = vmatpush.bf16.msra.mxu0 %v756
        %844 = vmatpush.bf16.msra.mxu0 %v754
        %845 = vmatpush.bf16.msra.mxu0 %v752
        %846 = vmatpush.bf16.msra.mxu0 %v750
        %847 = vmatmul.bf16.gmra.mxu0 %v651
        %v848 = vpop.f32.mrf.mxu0
        %v849 = vadd.f32 0.0, %v848
        %v850 = vpop.f32.mrf.mxu0
        %851 = vdwg.mxu0
        %852 = vmatpush.bf16.msra.mxu0 %v780
        %853 = vmatpush.bf16.msra.mxu0 %v778
        %854 = vmatpush.bf16.msra.mxu0 %v776
        %855 = vmatpush.bf16.msra.mxu0 %v774
        %856 = vmatpush.bf16.msra.mxu0 %v772
        %857 = vmatpush.bf16.msra.mxu0 %v770
        %858 = vmatpush.bf16.msra.mxu0 %v768
        %859 = vmatpush.bf16.msra.mxu0 %v766
        %860 = vmatmul.bf16.gmra.mxu0 %v652
        %v861 = vpop.f32.mrf.mxu0
        %v862 = vadd.f32 %v849, %v861
        %v863 = vpop.f32.mrf.mxu0
        %864 = vdwg.mxu0
        %v897 = vunpack.c.l.b16 %v375
        %v898 = vunpack.c.h.b16 %v375
        %v899 = vunpack.c.l.b16 %v376
        %v900 = vunpack.c.h.b16 %v376
        %v901 = vunpack.c.l.b16 %v377
        %v902 = vunpack.c.h.b16 %v377
        %v903 = vunpack.c.l.b16 %v378
        %v904 = vunpack.c.h.b16 %v378
        %v905 = vunpack.c.l.b16 %v379
        %v906 = vunpack.c.h.b16 %v379
        %v907 = vunpack.c.l.b16 %v380
        %v908 = vunpack.c.h.b16 %v380
        %v909 = vunpack.c.l.b16 %v381
        %v910 = vunpack.c.h.b16 %v381
        %v911 = vunpack.c.l.b16 %v382
        %v912 = vunpack.c.h.b16 %v382
        %v913 = vunpack.c.l.b16 %v383
        %v914 = vunpack.c.h.b16 %v383
        %v915 = vunpack.c.l.b16 %v384
        %v916 = vunpack.c.h.b16 %v384
        %v917 = vunpack.c.l.b16 %v385
        %v918 = vunpack.c.h.b16 %v385
        %v919 = vunpack.c.l.b16 %v386
        %v920 = vunpack.c.h.b16 %v386
        %v921 = vunpack.c.l.b16 %v387
        %v922 = vunpack.c.h.b16 %v387
        %v923 = vunpack.c.l.b16 %v388
        %v924 = vunpack.c.h.b16 %v388
        %v925 = vunpack.c.l.b16 %v389
        %v926 = vunpack.c.h.b16 %v389
        %v927 = vunpack.c.l.b16 %v390
        %v928 = vunpack.c.h.b16 %v390
        %v929 = vunpack.c.l.b16 %v391
        %v930 = vunpack.c.h.b16 %v391
        %v931 = vunpack.c.l.b16 %v392
        %v932 = vunpack.c.h.b16 %v392
        %v933 = vunpack.c.l.b16 %v393
        %v934 = vunpack.c.h.b16 %v393
        %v935 = vunpack.c.l.b16 %v394
        %v936 = vunpack.c.h.b16 %v394
        %v937 = vunpack.c.l.b16 %v395
        %v938 = vunpack.c.h.b16 %v395
        %v939 = vunpack.c.l.b16 %v396
        %v940 = vunpack.c.h.b16 %v396
        %v941 = vunpack.c.l.b16 %v397
        %v942 = vunpack.c.h.b16 %v397
        %v943 = vunpack.c.l.b16 %v398
        %v944 = vunpack.c.h.b16 %v398
        %v945 = vunpack.c.l.b16 %v399
        %v946 = vunpack.c.h.b16 %v399
        %v947 = vunpack.c.l.b16 %v400
        %v948 = vunpack.c.h.b16 %v400
        %v949 = vunpack.c.l.b16 %v401
        %v950 = vunpack.c.h.b16 %v401
        %v951 = vunpack.c.l.b16 %v402
        %v952 = vunpack.c.h.b16 %v402
        %v953 = vunpack.c.l.b16 %v403
        %v954 = vunpack.c.h.b16 %v403
        %v955 = vunpack.c.l.b16 %v404
        %v956 = vunpack.c.h.b16 %v404
        %v957 = vunpack.c.l.b16 %v405
        %v958 = vunpack.c.h.b16 %v405
        %v959 = vunpack.c.l.b16 %v406
        %v960 = vunpack.c.h.b16 %v406
        %v961 = vpack.c.b16 %v899, %v897
        %v962 = vpack.c.b16 %v900, %v898
        %v963 = vpack.c.b16 %v903, %v901
        %v964 = vpack.c.b16 %v904, %v902
        %v965 = vpack.c.b16 %v907, %v905
        %v966 = vpack.c.b16 %v908, %v906
        %v967 = vpack.c.b16 %v911, %v909
        %v968 = vpack.c.b16 %v912, %v910
        %v969 = vpack.c.b16 %v915, %v913
        %v970 = vpack.c.b16 %v916, %v914
        %v971 = vpack.c.b16 %v919, %v917
        %v972 = vpack.c.b16 %v920, %v918
        %v973 = vpack.c.b16 %v923, %v921
        %v974 = vpack.c.b16 %v924, %v922
        %v975 = vpack.c.b16 %v927, %v925
        %v976 = vpack.c.b16 %v928, %v926
        %v977 = vpack.c.b16 %v931, %v929
        %v978 = vpack.c.b16 %v932, %v930
        %v979 = vpack.c.b16 %v935, %v933
        %v980 = vpack.c.b16 %v936, %v934
        %v981 = vpack.c.b16 %v939, %v937
        %v982 = vpack.c.b16 %v940, %v938
        %v983 = vpack.c.b16 %v943, %v941
        %v984 = vpack.c.b16 %v944, %v942
        %v985 = vpack.c.b16 %v947, %v945
        %v986 = vpack.c.b16 %v948, %v946
        %v987 = vpack.c.b16 %v951, %v949
        %v988 = vpack.c.b16 %v952, %v950
        %v989 = vpack.c.b16 %v955, %v953
        %v990 = vpack.c.b16 %v956, %v954
        %v991 = vpack.c.b16 %v959, %v957
        %v992 = vpack.c.b16 %v960, %v958
        %1025 = vmatpush.bf16.msra.mxu0 %v975
        %1026 = vmatpush.bf16.msra.mxu0 %v973
        %1027 = vmatpush.bf16.msra.mxu0 %v971
        %1028 = vmatpush.bf16.msra.mxu0 %v969
        %1029 = vmatpush.bf16.msra.mxu0 %v967
        %1030 = vmatpush.bf16.msra.mxu0 %v965
        %1031 = vmatpush.bf16.msra.mxu0 %v963
        %1032 = vmatpush.bf16.msra.mxu0 %v961
        %1033 = vmatmul.bf16.gmra.mxu0 %v647
        %v1034 = vpop.f32.mrf.mxu0
        %v1035 = vadd.f32 %v836, %v1034
        %v1036 = vpop.f32.mrf.mxu0
        %1037 = vdwg.mxu0
        %1038 = vmatpush.bf16.msra.mxu0 %v991
        %1039 = vmatpush.bf16.msra.mxu0 %v989
        %1040 = vmatpush.bf16.msra.mxu0 %v987
        %1041 = vmatpush.bf16.msra.mxu0 %v985
        %1042 = vmatpush.bf16.msra.mxu0 %v983
        %1043 = vmatpush.bf16.msra.mxu0 %v981
        %1044 = vmatpush.bf16.msra.mxu0 %v979
        %1045 = vmatpush.bf16.msra.mxu0 %v977
        %1046 = vmatmul.bf16.gmra.mxu0 %v648
        %v1047 = vpop.f32.mrf.mxu0
        %v1048 = vadd.f32 %v1035, %v1047
        %v1049 = vpop.f32.mrf.mxu0
        %1050 = vdwg.mxu0
        %1051 = vmatpush.bf16.msra.mxu0 %v976
        %1052 = vmatpush.bf16.msra.mxu0 %v974
        %1053 = vmatpush.bf16.msra.mxu0 %v972
        %1054 = vmatpush.bf16.msra.mxu0 %v970
        %1055 = vmatpush.bf16.msra.mxu0 %v968
        %1056 = vmatpush.bf16.msra.mxu0 %v966
        %1057 = vmatpush.bf16.msra.mxu0 %v964
        %1058 = vmatpush.bf16.msra.mxu0 %v962
        %1059 = vmatmul.bf16.gmra.mxu0 %v647
        %v1060 = vpop.f32.mrf.mxu0
        %v1061 = vadd.f32 %v862, %v1060
        %v1062 = vpop.f32.mrf.mxu0
        %1063 = vdwg.mxu0
        %1064 = vmatpush.bf16.msra.mxu0 %v992
        %1065 = vmatpush.bf16.msra.mxu0 %v990
        %1066 = vmatpush.bf16.msra.mxu0 %v988
        %1067 = vmatpush.bf16.msra.mxu0 %v986
        %1068 = vmatpush.bf16.msra.mxu0 %v984
        %1069 = vmatpush.bf16.msra.mxu0 %v982
        %1070 = vmatpush.bf16.msra.mxu0 %v980
        %1071 = vmatpush.bf16.msra.mxu0 %v978
        %1072 = vmatmul.bf16.gmra.mxu0 %v648
        %v1073 = vpop.f32.mrf.mxu0
        %v1074 = vadd.f32 %v1061, %v1073
        %v1075 = vpop.f32.mrf.mxu0
        %1076 = vdwg.mxu0
        %v1077 = vmax.f32 %v1048, 0.0
        %v1078 = vmax.f32 %v1074, 0.0
        %v1080 = vperm.slane %v371, 0
        %v1081 = vperm.slane %v371, 1
        %v1084 = vmul.f32 %v1077, %v1080
        %v1085 = vmul.f32 %v1078, %v1081
        %v1087 = vperm.slane %v373, 0
        %v1088 = vperm.slane %v373, 1
        %v1091 = vadd.f32 %v1084, %v1087
        %v1092 = vadd.f32 %v1085, %v1088
        %v1093 = vpack.c.bf16 %v1092, %v1091
        %1094 = vst [vmem:[%s367] sm:$0xff] %v1093
        %v1095 = vpack.c.bf16 %v1077, %v1077
        %v1096 = vpack.c.bf16 %v1078, %v1078
        %v1129 = vunpack.c.l.b16 %v439
        %v1130 = vunpack.c.l.b16 %v440
        %v1131 = vunpack.c.l.b16 %v441
        %v1132 = vunpack.c.l.b16 %v442
        %v1133 = vunpack.c.l.b16 %v443
        %v1134 = vunpack.c.l.b16 %v444
        %v1135 = vunpack.c.l.b16 %v445
        %v1136 = vunpack.c.l.b16 %v446
        %v1137 = vunpack.c.l.b16 %v447
        %v1138 = vunpack.c.l.b16 %v448
        %v1139 = vunpack.c.l.b16 %v449
        %v1140 = vunpack.c.l.b16 %v450
        %v1141 = vunpack.c.l.b16 %v451
        %v1142 = vunpack.c.l.b16 %v452
        %v1143 = vunpack.c.l.b16 %v453
        %v1144 = vunpack.c.l.b16 %v454
        %v1145 = vunpack.c.l.b16 %v455
        %v1146 = vunpack.c.l.b16 %v456
        %v1147 = vunpack.c.l.b16 %v457
        %v1148 = vunpack.c.l.b16 %v458
        %v1149 = vunpack.c.l.b16 %v459
        %v1150 = vunpack.c.l.b16 %v460
        %v1151 = vunpack.c.l.b16 %v461
        %v1152 = vunpack.c.l.b16 %v462
        %v1153 = vunpack.c.l.b16 %v463
        %v1154 = vunpack.c.l.b16 %v464
        %v1155 = vunpack.c.l.b16 %v465
        %v1156 = vunpack.c.l.b16 %v466
        %v1157 = vunpack.c.l.b16 %v467
        %v1158 = vunpack.c.l.b16 %v468
        %v1159 = vunpack.c.l.b16 %v469
        %v1160 = vunpack.c.l.b16 %v470
        %v1161 = vpack.c.b16 %v1130, %v1129
        %v1162 = vpack.c.b16 %v1132, %v1131
        %v1163 = vpack.c.b16 %v1134, %v1133
        %v1164 = vpack.c.b16 %v1136, %v1135
        %v1165 = vpack.c.b16 %v1138, %v1137
        %v1166 = vpack.c.b16 %v1140, %v1139
        %v1167 = vpack.c.b16 %v1142, %v1141
        %v1168 = vpack.c.b16 %v1144, %v1143
        %v1169 = vpack.c.b16 %v1146, %v1145
        %v1170 = vpack.c.b16 %v1148, %v1147
        %v1171 = vpack.c.b16 %v1150, %v1149
        %v1172 = vpack.c.b16 %v1152, %v1151
        %v1173 = vpack.c.b16 %v1154, %v1153
        %v1174 = vpack.c.b16 %v1156, %v1155
        %v1175 = vpack.c.b16 %v1158, %v1157
        %v1176 = vpack.c.b16 %v1160, %v1159
        %1193 = vmatpush.bf16.msra.mxu0 %v1168
        %1194 = vmatpush.bf16.msra.mxu0 %v1167
        %1195 = vmatpush.bf16.msra.mxu0 %v1166
        %1196 = vmatpush.bf16.msra.mxu0 %v1165
        %1197 = vmatpush.bf16.msra.mxu0 %v1164
        %1198 = vmatpush.bf16.msra.mxu0 %v1163
        %1199 = vmatpush.bf16.msra.mxu0 %v1162
        %1200 = vmatpush.bf16.msra.mxu0 %v1161
        %1201 = vmatmul.bf16.gmra.mxu0 %v1095
        %v1202 = vpop.f32.mrf.mxu0
        %v1203 = vadd.f32 %v374, %v1202
        %v1204 = vpop.f32.mrf.mxu0
        %1205 = vdwg.mxu0
        %1206 = vmatpush.bf16.msra.mxu0 %v1176
        %1207 = vmatpush.bf16.msra.mxu0 %v1175
        %1208 = vmatpush.bf16.msra.mxu0 %v1174
        %1209 = vmatpush.bf16.msra.mxu0 %v1173
        %1210 = vmatpush.bf16.msra.mxu0 %v1172
        %1211 = vmatpush.bf16.msra.mxu0 %v1171
        %1212 = vmatpush.bf16.msra.mxu0 %v1170
        %1213 = vmatpush.bf16.msra.mxu0 %v1169
        %1214 = vmatmul.bf16.gmra.mxu0 %v1096
        %v1215 = vpop.f32.mrf.mxu0
        %v1216 = vadd.f32 %v1203, %v1215
        %v1217 = vpop.f32.mrf.mxu0
        %1218 = vdwg.mxu0
        %v1219 = vpack.c.bf16 %v1216, %v1216
        %1220 = vst [vmem:[%s360] sm:$0xf] %v1219
        %s1221 = sand.u32 %s154, 1
        %s1222 = scalar_lea.sflag [#allocation4], %s1221
        %s1223 = sand.u32 %s154, 1
        %s1224 = smul.addr %s1223, 4
        %s1225 = scalar_lea.vmem [#allocation11], %s1224
        %s1226 = sand.u32 %s180, 1
        %s1227 = scalar_lea.sflag [#allocation13], %s1226
        %s1228 = sand.u32 %s180, 1
        %s1229 = smul.addr %s1228, 8
        %s1230 = scalar_lea.vmem [#allocation12], %s1229
        // Predicated region
        $region61: #{baseline_head.1} parent=39 // pred_check
          %p1231 = pneg %p164
        $region62: #{baseline_head.1} parent=39 // pred_check_branch
          %1233 = sbr.rel (%p1231) target = $region64
        $region63: #{baseline_head.1} parent=39 // pred_region
          %1235 = vsyncadd %s1222, 0
          %s1236 = smul.addr %s31, 4
          %s1237 = scalar_lea.hbm %s5, %s1236
          %s1239 = sshll.u32 %s1225, 4
          %s1240 = int_to_ptr.vmem [resolvable:$true] %s1239
          %s1241 = sshll.u32 %s1237, 4
          %s1242 = int_to_ptr.hbm [resolvable:$true] %s1241
          %1244 = dma.vmem_to_hbm [thread:$0]  %s1240, 64, %s1242, %s1222
        $region64: #{baseline_head.1} parent=39 // pred_fallthru
          _
        // Predicated region
        $region65: #{baseline_head.1} parent=39 // pred_check
          %p1245 = pneg %p190
        $region66: #{baseline_head.1} parent=39 // pred_check_branch
          %1247 = sbr.rel (%p1245) target = $region68
        $region67: #{baseline_head.1} parent=39 // pred_region
          %1249 = vsyncadd %s1227, 0
          %s1250 = smul.addr %s31, 2
          %s1251 = smul.addr %s1250, 4
          %s1252 = scalar_lea.hbm %s6, %s1251
          %s1254 = sshll.u32 %s1230, 4
          %s1255 = int_to_ptr.vmem [resolvable:$true] %s1254
          %s1256 = sshll.u32 %s1252, 4
          %s1257 = int_to_ptr.hbm [resolvable:$true] %s1256
          %1259 = dma.vmem_to_hbm [thread:$0]  %s1255, 128, %s1257, %s1227
        $region68: #{baseline_head.1} parent=39 // pred_fallthru
          _
      $region40: #{baseline_head.1} parent=5 // pred_fallthru
        _
      %p1260 = scmp.le.s32.totalorder 2, %s26
      // Predicated region
      $region69: #{baseline_head.1} parent=5 // pred_check
        %p1261 = pneg %p1260
      $region70: #{baseline_head.1} parent=5 // pred_check_branch
        %1263 = sbr.rel (%p1261) target = $region72
      $region71: #{baseline_head.1} parent=5 // pred_region
        %s1264 = ssub.s32 %s26, 2
        // Predicated region
        $region73: #{baseline_head.1} parent=71 // pred_check
          %p1265 = pneg %p170
        $region74: #{baseline_head.1} parent=71 // pred_check_branch
          %1267 = sbr.rel (%p1265) target = $region76
        $region75: #{baseline_head.1} parent=71 // pred_region
          %s1268 = sand.u32 %s155, 1
          %s1269 = scalar_lea.sflag [#allocation4], %s1268
          %s1270 = sand.u32 %s155, 1
          %s1271 = smul.addr %s1270, 4
          %s1272 = scalar_lea.vmem [#allocation11], %s1271
          %1274 = dma.done %s1269, 64
        $region76: #{baseline_head.1} parent=71 // pred_fallthru
          _
        // Predicated region
        $region77: #{baseline_head.1} parent=71 // pred_check
          %p1275 = pneg %p196
        $region78: #{baseline_head.1} parent=71 // pred_check_branch
          %1277 = sbr.rel (%p1275) target = $region80
        $region79: #{baseline_head.1} parent=71 // pred_region
          %s1278 = sand.u32 %s181, 1
          %s1279 = scalar_lea.sflag [#allocation13], %s1278
          %s1280 = sand.u32 %s181, 1
          %s1281 = smul.addr %s1280, 8
          %s1282 = scalar_lea.vmem [#allocation12], %s1281
          %1284 = dma.done %s1279, 128
        $region80: #{baseline_head.1} parent=71 // pred_fallthru
          _
      $region72: #{baseline_head.1} parent=5 // pred_fallthru
        _
    $region6: #{baseline_head.1} parent=1 // loop_footer
      %s30 = sadd.s32 1, %s26
    $region7: #{baseline_head.1} parent=1 // loop_footer_branch
      %25 = sbr.rel target = $region3
    $region8: #{baseline_head.1} parent=1 // loop_exit
      _
    %1285 = vsyncpa [#allocation3], 1
    %s1286 = scalar_lea.sflag [#allocation3], 1
    %1287 = vsyncpa %s1286, 1
    %1288 = vsyncpa [#allocation6], 1
    %s1289 = scalar_lea.sflag [#allocation6], 1
    %1290 = vsyncpa %s1289, 1
    %1291 = vsyncpa [#allocation9], 1
    %1292 = vsyncpa [#allocation4], 1
    %s1293 = scalar_lea.sflag [#allocation4], 1
    %1294 = vsyncpa %s1293, 1
    %1295 = vsyncpa [#allocation13], 1
    %s1296 = scalar_lea.sflag [#allocation13], 1
    %1297 = vsyncpa %s1296, 1

</llo_original>
